<compile_context>
chip_gen: v6e
topology: v6e:2x2x1
jax: 0.10.0
libtpu: 0.0.40
codegen_flags: <defaults>
</compile_context>

<pallas_src>
import jax
import jax.numpy as jnp
from jax.experimental import pallas as pl
from jax.experimental.pallas import tpu as pltpu


def _round_up(x, m):
    return (x + m - 1) // m * m


def _largest_lane_tile(n_pad, cap):
    """Largest multiple of 128 <= cap that divides n_pad (n_pad % 128 == 0)."""
    tn = max(128, (min(cap, n_pad) // 128) * 128)
    while tn > 128 and n_pad % tn:
        tn -= 128
    return tn


def _vmem_budget_bytes():
    """~3/4 of physical VMEM: ~48 MiB on v7x, ~96 MiB on v5e/v6e."""
    cap = None
    try:
        cap = getattr(pltpu.get_tpu_info(), "vmem_capacity_bytes", None)
    except Exception:
        cap = None
    if not cap:
        cap = 64 * 1024 * 1024  # conservative (v7x-sized) fallback
    return int(cap) * 3 // 4


def _network_kernel(x_ref, w_ref, b_ref, o_ref):
    # x_ref : (TM, TK)  bf16  raw flattened image tile
    # w_ref : (TK, TN)  bf16  normalization-folded classifier weight tile
    # b_ref : (1,  TN)  f32   normalization-folded bias (zero in padding)
    # o_ref : (TM, TN)  f32   logits tile; resident across the K axis and used
    #                         directly as the accumulator (no scratch, no
    #                         epilogue copy)
    k = pl.program_id(2)

    @pl.when(k == 0)
    def _init():
        o_ref[...] = jnp.broadcast_to(b_ref[...], o_ref.shape)

    # One MXU push per grid step: bf16 operands, f32 accumulation into o_ref.
    o_ref[...] += jnp.dot(
        x_ref[...], w_ref[...], preferred_element_type=jnp.float32
    )


def prepare_network_params(im_mean, im_std, w, b, *, max_tm=512):
    """One-time (per model) preparation: fold normalization into the linear
    head, cast to bf16, pad to the kernel's tile plan.  Call once and reuse
    the returned params across all forward queries (the attack loop)."""
    C, HW, n_class = w.shape
    K = C * HW

    w32 = jnp.asarray(w, jnp.float32).reshape(C, HW, n_class)
    b32 = jnp.asarray(b, jnp.float32).reshape(1, n_class)

    if im_mean is not None and im_std is not None:
        mean = jnp.asarray(im_mean, jnp.float32).reshape(C, 1, 1)
        inv_std = 1.0 / jnp.asarray(im_std, jnp.float32).reshape(C, 1, 1)
        # ((x - mean) * inv_std) @ W + b
        #   == x @ (inv_std * W) + (b - sum_{c,hw} mean * inv_std * W)
        w_eff = inv_std * w32
        b_eff = b32 - jnp.sum(mean * inv_std * w32, axis=(0, 1))[None, :]
    else:
        w_eff, b_eff = w32, b32

    N_pad = _round_up(n_class, 128)          # lane-dense, unmasked stores
    TN_budget = _largest_lane_tile(N_pad, 512)
    budget = _vmem_budget_bytes()

    # Per-step VMEM (double-buffered windows):
    #   x: 2*TM*TK*2   w: 2*TK*TN*2   out: 2*TM*TN*4   bias: 2*TN*4
    fixed = 2 * max_tm * TN_budget * 4 + 2 * TN_budget * 4
    per_tk = 2 * max_tm * 2 + 2 * TN_budget * 2
    tk_cap = max(128, ((budget - fixed) // per_tk // 128) * 128)
    TK = min(tk_cap, _round_up(K, 128))
    K_pad = _round_up(K, TK)

    w_flat = jnp.pad(
        w_eff.reshape(K, n_class), ((0, K_pad - K), (0, N_pad - n_class))
    ).astype(jnp.bfloat16)                   # MXU-native, zero-filled padding
    b_pad = jnp.pad(b_eff, ((0, 0), (0, N_pad - n_class)))  # f32

    return dict(
        w_flat=w_flat, b_pad=b_pad,
        C=C, HW=HW, K=K, K_pad=K_pad, n_class=n_class, N_pad=N_pad,
        TK=TK, max_tm=max_tm, vmem_budget=budget,
    )


def network_forward(image, params):
    """Pallas equivalent of Network.forward (normalize + linear classifier).

    image  : float NCHW array (a 3-D CHW input is unsqueezed to batch 1).
    params : output of prepare_network_params (folded bf16 weight, f32 bias).
    Returns logits of shape (B, n_class), float32.
    """
    if image.ndim != 4:  # matches `if len(image.size()) != 4: unsqueeze(0)`
        image = image[None]
    B, C, H, W = image.shape
    K = C * H * W
    assert C == params["C"] and K == params["K"], "image shape mismatch"

    K_pad, N_pad, TK = params["K_pad"], params["N_pad"], params["TK"]
    n_class = params["n_class"]

    # --- M tiling: bf16-friendly (multiple of 16), larger TM = fewer full
    # weight passes for big attack batches ---
    if B >= 512:
        TM = 512
    elif B >= 256:
        TM = 256
    elif B >= 128:
        TM = 128
    else:
        TM = _round_up(B, 16)
    TM = min(TM, params["max_tm"])
    B_pad = _round_up(B, TM)

    # --- N tiling: bounds VMEM for large n_class; when only one (M,N) tile
    # exists (small-batch queries), split N so both v7x TCs stream weights ---
    TN = _largest_lane_tile(N_pad, 512)
    if B_pad // TM == 1 and N_pad // TN == 1 and N_pad >= 256:
        TN = _largest_lane_tile(N_pad, N_pad // 2)

    x = image.reshape(B, K).astype(jnp.float32)
    x = jnp.pad(x, ((0, B_pad - B), (0, K_pad - K))).astype(jnp.bfloat16)

    grid = (B_pad // TM, N_pad // TN, K_pad // TK)  # reduction (K) axis last
    m_tiles, n_tiles, _ = grid

    cost = pl.CostEstimate(
        flops=2 * B_pad * K_pad * N_pad,
        transcendentals=0,
        bytes_accessed=(
            K_pad * N_pad * 2 * m_tiles      # weight, re-streamed per M tile
            + B_pad * K_pad * 2 * n_tiles    # x, re-streamed per N tile
            + B_pad * N_pad * 4              # logits
        ),
    )

    out = pl.pallas_call(
        _network_kernel,
        out_shape=jax.ShapeDtypeStruct((B_pad, N_pad), jnp.float32),
        grid_spec=pltpu.PrefetchScalarGridSpec(
            num_scalar_prefetch=0,
            grid=grid,
            in_specs=[
                pl.BlockSpec((TM, TK), lambda i, j, k: (i, k)),    # x
                pl.BlockSpec((TK, TN), lambda i, j, k: (k, j)),    # W_eff
                pl.BlockSpec((1, TN), lambda i, j, k: (0, j)),     # b_eff
            ],
            out_specs=pl.BlockSpec((TM, TN), lambda i, j, k: (i, j)),
        ),
        compiler_params=pltpu.CompilerParams(
            dimension_semantics=("parallel", "parallel", "arbitrary"),
            vmem_limit_bytes=params["vmem_budget"],
        ),
        cost_estimate=cost,
    )(x, params["w_flat"], params["b_pad"])

    return out[:B, :n_class]


# TODO(synk): the ONNX-runtime fallback branch and the stateful num_queries
# counter in predict_prob have no Pallas equivalent and are not modeled.
# TODO(synk): folding mean/std into W/b is exact only because the realized
# model is a linear head; for a nonlinear wrapped model keep the normalization
# in-kernel as x * inv_std - mean*inv_std (multiply, not divide).

if __name__ == "__main__":
    key = jax.random.PRNGKey(0)
    k_x, k_w, k_b = jax.random.split(key, 3)

    B, C, H, W = 2, 4, 16, 16
    n_class = 10

    x = jax.random.normal(k_x, (B, C, H, W), dtype=jnp.float32)
    im_mean = jnp.array([0.485, 0.456, 0.406, 0.5], dtype=jnp.float32)
    im_std = jnp.array([0.229, 0.224, 0.225, 0.25], dtype=jnp.float32)
    w = 0.02 * jax.random.normal(k_w, (C, H * W, n_class), dtype=jnp.float32)
    b = 0.01 * jax.random.normal(k_b, (1, n_class), dtype=jnp.float32)

    # One-time weight preparation (folded normalization, bf16, padded).
    params = prepare_network_params(im_mean, im_std, w, b)

    logits = jax.block_until_ready(network_forward(x, params))
    assert logits.shape == (B, n_class)

    # Reference 1: exact PyTorch-semantics f32 path (normalize, then linear
    # head).  Kernel uses bf16 matmul operands (f32 accumulation), so allow a
    # bf16-level tolerance here.
    xn = (x - im_mean.reshape(1, C, 1, 1)) / im_std.reshape(1, C, 1, 1)
    ref_f32 = (
        jnp.dot(xn.reshape(B, C * H * W), w.reshape(C * H * W, n_class)) + b
    )
    assert jnp.allclose(logits, ref_f32, atol=5e-2, rtol=5e-2)

    # Reference 2: same operand rounding as the kernel (normalization folded,
    # bf16 inputs, f32 accumulation) -> tight tolerance validates the kernel's
    # tiling / accumulation / padding-and-slice plumbing itself.
    inv_std = 1.0 / im_std
    w_eff_ref = (w * inv_std.reshape(C, 1, 1)).reshape(C * H * W, n_class)
    b_eff_ref = b - jnp.sum(
        (im_mean * inv_std).reshape(C, 1, 1) * w, axis=(0, 1)
    )[None, :]
    x_bf = x.reshape(B, C * H * W).astype(jnp.bfloat16).astype(jnp.float32)
    w_bf = w_eff_ref.astype(jnp.bfloat16).astype(jnp.float32)
    ref_bf16 = jnp.dot(x_bf, w_bf, preferred_element_type=jnp.float32) + b_eff_ref
    assert jnp.allclose(logits, ref_bf16, atol=2e-3, rtol=2e-3)

    print("KERNEL_OK")
</pallas_src>

<mosaic_0001>
module attributes {stable_mosaic.version = 11 : i64} {
  func.func @_network_kernel(%arg0: i32, %arg1: i32, %arg2: i32, %arg3: memref<16x1024xbf16, #tpu.memory_space<vmem>>, %arg4: memref<1024x128xbf16, #tpu.memory_space<vmem>>, %arg5: memref<1x128xf32, #tpu.memory_space<vmem>>, %arg6: memref<16x128xf32, #tpu.memory_space<vmem>>) attributes {dimension_semantics = [#tpu.dimension_semantics<parallel>, #tpu.dimension_semantics<parallel>, #tpu.dimension_semantics<arbitrary>], iteration_bounds = array<i64: 1, 1, 1>, scalar_prefetch = 0 : i64, scratch_operands = 0 : i64, tpu.core_type = #tpu.core_type<tc>, window_params = [{transform_indices = @transform_0, window_bounds = array<i64: 16, 1024>}, {transform_indices = @transform_1, window_bounds = array<i64: 1024, 128>}, {transform_indices = @transform_2, window_bounds = array<i64: 1, 128>}, {transform_indices = @transform_3, window_bounds = array<i64: 16, 128>}]} {
    %c0_i32 = arith.constant 0 : i32
    %0 = arith.cmpi eq, %arg2, %c0_i32 : i32
    %1 = arith.extui %0 : i1 to i32
    %c0_i32_0 = arith.constant 0 : i32
    %2 = arith.cmpi ne, %1, %c0_i32_0 : i32
    scf.if %2 {
      %c0_8 = arith.constant 0 : index
      %c0_9 = arith.constant 0 : index
      %9 = vector.load %arg5[%c0_8, %c0_9] : memref<1x128xf32, #tpu.memory_space<vmem>>, vector<1x128xf32>
      %10 = vector.shape_cast %9 : vector<1x128xf32> to vector<1x128xf32>
      %11 = vector.broadcast %10 : vector<1x128xf32> to vector<16x128xf32>
      %c0_10 = arith.constant 0 : index
      %c0_11 = arith.constant 0 : index
      %12 = vector.load %arg6[%c0_10, %c0_11] : memref<16x128xf32, #tpu.memory_space<vmem>>, vector<16x128xf32>
      tpu.vector_store %arg6[%c0_10, %c0_11], %11 {strides = array<i32>} : memref<16x128xf32, #tpu.memory_space<vmem>>, vector<16x128xf32>,
    } else {
    }
    %c0 = arith.constant 0 : index
    %c0_1 = arith.constant 0 : index
    %3 = vector.load %arg6[%c0, %c0_1] : memref<16x128xf32, #tpu.memory_space<vmem>>, vector<16x128xf32>
    %c0_2 = arith.constant 0 : index
    %c0_3 = arith.constant 0 : index
    %4 = vector.load %arg3[%c0_2, %c0_3] : memref<16x1024xbf16, #tpu.memory_space<vmem>>, vector<16x1024xbf16>
    %c0_4 = arith.constant 0 : index
    %c0_5 = arith.constant 0 : index
    %5 = vector.load %arg4[%c0_4, %c0_5] : memref<1024x128xbf16, #tpu.memory_space<vmem>>, vector<1024x128xbf16>
    %cst = arith.constant dense<0.000000e+00> : vector<16x128xf32>
    %6 = tpu.matmul %4, %5, %cst {dimension_numbers = #tpu.dot_dimension_numbers<[1], [0], [0], [1], [0, 0, 1, 1], [], []>} : vector<16x1024xbf16>, vector<1024x128xbf16>, vector<16x128xf32> -> vector<16x128xf32>
    %7 = arith.addf %3, %6 : vector<16x128xf32>
    %c0_6 = arith.constant 0 : index
    %c0_7 = arith.constant 0 : index
    %8 = vector.load %arg6[%c0_6, %c0_7] : memref<16x128xf32, #tpu.memory_space<vmem>>, vector<16x128xf32>
    tpu.vector_store %arg6[%c0_6, %c0_7], %7 {strides = array<i32>} : memref<16x128xf32, #tpu.memory_space<vmem>>, vector<16x128xf32>,
    return
  }
  func.func @transform_0(%arg0: i32, %arg1: i32, %arg2: i32) -> (i32, i32) {
    %c0_i32 = arith.constant 0 : i32
    return %arg0, %arg2 : i32, i32
  }
  func.func @transform_1(%arg0: i32, %arg1: i32, %arg2: i32) -> (i32, i32) {
    %c0_i32 = arith.constant 0 : i32
    return %arg2, %arg1 : i32, i32
  }
  func.func @transform_2(%arg0: i32, %arg1: i32, %arg2: i32) -> (i32, i32) {
    %c0_i32 = arith.constant 0 : i32
    %c0_i32_0 = arith.constant 0 : i32
    return %c0_i32, %arg1 : i32, i32
  }
  func.func @transform_3(%arg0: i32, %arg1: i32, %arg2: i32) -> (i32, i32) {
    %c0_i32 = arith.constant 0 : i32
    return %arg0, %arg1 : i32, i32
  }
}

</mosaic_0001>

<llo_original>
// kernel: tpu_custom_call.1
$region0: #{tpu_custom_call.1}
  #allocation0 [shape = 'u32[]', space=smem, size = 0x4, offset = 0x4, fixed_abs, tag = 'smem constant byte address 0x4 - core index']
  #allocation1 [shape = 'u32[144,128]{1,0:T(1,128)}', space=vmem, size = 0x12000, scoped, tag = 'internal scratch']
  %s0 = inlined_call_operand.hbm [shape: bf16[16,1024], index: 0, kind: input, shape index: {}]
  %s1 = inlined_call_operand.hbm [shape: bf16[1024,128], index: 1, kind: input, shape index: {}]
  %s2 = inlined_call_operand.vmem [shape: f32[1,128], index: 2, kind: input, shape index: {}]
  %s3 = inlined_call_operand.hbm [shape: f32[16,128], index: 3, kind: output, shape index: {}]
  %s4 = sld [smem:[#allocation0]]
  $region34: #{tpu_custom_call.1} parent=0
    _
  %s6 = ssub.s32 1, %s4
  %s7 = scalar_select 0, %s6, %s4
  $region1: #{tpu_custom_call.1} parent=0
    #allocation2 [shape = 'u8[32768]{0}', space=vmem, size = 0x8000, scoped, tag = 'input window, operand 0, single buffered']
    #allocation3 [shape = 's32[1]{0}', space=sflag, size = 0x4, scoped, tag = 'scoped memory for tpu_custom_call.1']
    #allocation4 [shape = 's32[1]{0}', space=sflag, size = 0x4, scoped, tag = 'scoped memory for tpu_custom_call.1']
    #allocation5 [shape = 'u8[262144]{0}', space=vmem, size = 0x40000, scoped, tag = 'input window, operand 1, single buffered']
    #allocation6 [shape = 's32[1]{0}', space=sflag, size = 0x4, scoped, tag = 'scoped memory for tpu_custom_call.1']
    #allocation7 [shape = 'u8[8192]{0}', space=vmem, size = 0x2000, scoped, tag = 'output window, operand 0, single buffered']
    %8 = vsyncpa [#allocation3], 0
    %9 = vsyncpa [#allocation6], 0
    %10 = vsyncpa [#allocation4], 0
    // Predicated region
    $region2: #{tpu_custom_call.1} parent=1 // pred_check
      _
    $region3: #{tpu_custom_call.1} parent=1 // pred_check_branch
      %12 = sbr.rel (0) target = $region5
    $region4: #{tpu_custom_call.1} parent=1 // pred_region
      %s14 = ssub.s32 1024, 1024
      %15 = vsyncadd [#allocation3], %s14
      %s16 = sshll.u32 [#allocation2], 4
      %s17 = int_to_ptr.vmem [resolvable:$true] %s16
      %22 = dma.hbm_to_vmem [thread:$0]  %s0, 1024, %s17, [#allocation3], 512, 512, 32
    $region5: #{tpu_custom_call.1} parent=1 // pred_fallthru
      _
    // Predicated region
    $region6: #{tpu_custom_call.1} parent=1 // pred_check
      _
    $region7: #{tpu_custom_call.1} parent=1 // pred_check_branch
      %24 = sbr.rel (0) target = $region9
    $region8: #{tpu_custom_call.1} parent=1 // pred_region
      %s26 = ssub.s32 8192, 8192
      %27 = vsyncadd [#allocation6], %s26
      %s28 = sshll.u32 [#allocation5], 4
      %s29 = int_to_ptr.vmem [resolvable:$true] %s28
      %34 = dma.hbm_to_vmem [thread:$0]  %s1, 8192, %s29, [#allocation6], 64, 64, 4
    $region9: #{tpu_custom_call.1} parent=1 // pred_fallthru
      _
    // Predicated region
    $region10: #{tpu_custom_call.1} parent=1 // pred_check
      _
    $region11: #{tpu_custom_call.1} parent=1 // pred_check_branch
      %36 = sbr.rel (0) target = $region13
    $region12: #{tpu_custom_call.1} parent=1 // pred_region
      _
    $region13: #{tpu_custom_call.1} parent=1 // pred_fallthru
      _
    // Predicated region
    $region14: #{tpu_custom_call.1} parent=1 // pred_check
      _
    $region15: #{tpu_custom_call.1} parent=1 // pred_check_branch
      %38 = sbr.rel (0) target = $region17
    $region16: #{tpu_custom_call.1} parent=1 // pred_region
      %39 = dma.done [#allocation3], 1024
    $region17: #{tpu_custom_call.1} parent=1 // pred_fallthru
      _
    // Predicated region
    $region18: #{tpu_custom_call.1} parent=1 // pred_check
      _
    $region19: #{tpu_custom_call.1} parent=1 // pred_check_branch
      %41 = sbr.rel (0) target = $region21
    $region20: #{tpu_custom_call.1} parent=1 // pred_region
      %42 = dma.done [#allocation6], 8192
    $region21: #{tpu_custom_call.1} parent=1 // pred_fallthru
      _
    %p44 = scmp.eq.s32.totalorder 0, 0
    // Predicated region
    $region22: #{tpu_custom_call.1} parent=1 // pred_check
      %p45 = pneg %p44
    $region23: #{tpu_custom_call.1} parent=1 // pred_check_branch
      %47 = sbr.rel (%p45) target = $region25
    $region24: #{tpu_custom_call.1} parent=1 // pred_region
      %v48 = vld [vmem:[%s2] sm:$0x1]
      %v50 = vlaneseq
      %v51 = vshrl.u32 %v50, 7
      %v52 = vsub.s32 0, %v51
      %v53 = vrot.slane %v48, %v52
      %55 = vst [vmem:[#allocation7] sm:$0xff] %v53
      %56 = vst [vmem:[#allocation7 + $0x8] sm:$0xff] %v53
    $region25: #{tpu_custom_call.1} parent=1 // pred_fallthru
      _
    %v57 = vld [vmem:[#allocation7] sm:$0xff]
    %v58 = vld [vmem:[#allocation7 + $0x8] sm:$0xff]
    %v59 = vld [vmem:[#allocation2] sm:$0xff]
    %v60 = vld [vmem:[#allocation2 + $0x8] sm:$0xff]
    %v61 = vld [vmem:[#allocation2 + $0x10] sm:$0xff]
    %v62 = vld [vmem:[#allocation2 + $0x18] sm:$0xff]
    %v63 = vld [vmem:[#allocation2 + $0x20] sm:$0xff]
    %v64 = vld [vmem:[#allocation2 + $0x28] sm:$0xff]
    %v65 = vld [vmem:[#allocation2 + $0x30] sm:$0xff]
    %v66 = vld [vmem:[#allocation2 + $0x38] sm:$0xff]
    %v67 = vld [vmem:[#allocation5] sm:$0xf]
    %v68 = vld [vmem:[#allocation5 + $0x4] sm:$0xf]
    %v69 = vld [vmem:[#allocation5 + $0x8] sm:$0xf]
    %v70 = vld [vmem:[#allocation5 + $0xc] sm:$0xf]
    %v71 = vld [vmem:[#allocation5 + $0x10] sm:$0xf]
    %v72 = vld [vmem:[#allocation5 + $0x14] sm:$0xf]
    %v73 = vld [vmem:[#allocation5 + $0x18] sm:$0xf]
    %v74 = vld [vmem:[#allocation5 + $0x1c] sm:$0xf]
    %v75 = vld [vmem:[#allocation5 + $0x20] sm:$0xf]
    %v76 = vld [vmem:[#allocation5 + $0x24] sm:$0xf]
    %v77 = vld [vmem:[#allocation5 + $0x28] sm:$0xf]
    %v78 = vld [vmem:[#allocation5 + $0x2c] sm:$0xf]
    %v79 = vld [vmem:[#allocation5 + $0x30] sm:$0xf]
    %v80 = vld [vmem:[#allocation5 + $0x34] sm:$0xf]
    %v81 = vld [vmem:[#allocation5 + $0x38] sm:$0xf]
    %v82 = vld [vmem:[#allocation5 + $0x3c] sm:$0xf]
    %v83 = vld [vmem:[#allocation5 + $0x40] sm:$0xf]
    %v84 = vld [vmem:[#allocation5 + $0x44] sm:$0xf]
    %v85 = vld [vmem:[#allocation5 + $0x48] sm:$0xf]
    %v86 = vld [vmem:[#allocation5 + $0x4c] sm:$0xf]
    %v87 = vld [vmem:[#allocation5 + $0x50] sm:$0xf]
    %v88 = vld [vmem:[#allocation5 + $0x54] sm:$0xf]
    %v89 = vld [vmem:[#allocation5 + $0x58] sm:$0xf]
    %v90 = vld [vmem:[#allocation5 + $0x5c] sm:$0xf]
    %v91 = vld [vmem:[#allocation5 + $0x60] sm:$0xf]
    %v92 = vld [vmem:[#allocation5 + $0x64] sm:$0xf]
    %v93 = vld [vmem:[#allocation5 + $0x68] sm:$0xf]
    %v94 = vld [vmem:[#allocation5 + $0x6c] sm:$0xf]
    %v95 = vld [vmem:[#allocation5 + $0x70] sm:$0xf]
    %v96 = vld [vmem:[#allocation5 + $0x74] sm:$0xf]
    %v97 = vld [vmem:[#allocation5 + $0x78] sm:$0xf]
    %v98 = vld [vmem:[#allocation5 + $0x7c] sm:$0xf]
    %v99 = vld [vmem:[#allocation5 + $0x80] sm:$0xf]
    %v100 = vld [vmem:[#allocation5 + $0x84] sm:$0xf]
    %v101 = vld [vmem:[#allocation5 + $0x88] sm:$0xf]
    %v102 = vld [vmem:[#allocation5 + $0x8c] sm:$0xf]
    %v103 = vld [vmem:[#allocation5 + $0x90] sm:$0xf]
    %v104 = vld [vmem:[#allocation5 + $0x94] sm:$0xf]
    %v105 = vld [vmem:[#allocation5 + $0x98] sm:$0xf]
    %v106 = vld [vmem:[#allocation5 + $0x9c] sm:$0xf]
    %v107 = vld [vmem:[#allocation5 + $0xa0] sm:$0xf]
    %v108 = vld [vmem:[#allocation5 + $0xa4] sm:$0xf]
    %v109 = vld [vmem:[#allocation5 + $0xa8] sm:$0xf]
    %v110 = vld [vmem:[#allocation5 + $0xac] sm:$0xf]
    %v111 = vld [vmem:[#allocation5 + $0xb0] sm:$0xf]
    %v112 = vld [vmem:[#allocation5 + $0xb4] sm:$0xf]
    %v113 = vld [vmem:[#allocation5 + $0xb8] sm:$0xf]
    %v114 = vld [vmem:[#allocation5 + $0xbc] sm:$0xf]
    %v115 = vld [vmem:[#allocation5 + $0xc0] sm:$0xf]
    %v116 = vld [vmem:[#allocation5 + $0xc4] sm:$0xf]
    %v117 = vld [vmem:[#allocation5 + $0xc8] sm:$0xf]
    %v118 = vld [vmem:[#allocation5 + $0xcc] sm:$0xf]
    %v119 = vld [vmem:[#allocation5 + $0xd0] sm:$0xf]
    %v120 = vld [vmem:[#allocation5 + $0xd4] sm:$0xf]
    %v121 = vld [vmem:[#allocation5 + $0xd8] sm:$0xf]
    %v122 = vld [vmem:[#allocation5 + $0xdc] sm:$0xf]
    %v123 = vld [vmem:[#allocation5 + $0xe0] sm:$0xf]
    %v124 = vld [vmem:[#allocation5 + $0xe4] sm:$0xf]
    %v125 = vld [vmem:[#allocation5 + $0xe8] sm:$0xf]
    %v126 = vld [vmem:[#allocation5 + $0xec] sm:$0xf]
    %v127 = vld [vmem:[#allocation5 + $0xf0] sm:$0xf]
    %v128 = vld [vmem:[#allocation5 + $0xf4] sm:$0xf]
    %v129 = vld [vmem:[#allocation5 + $0xf8] sm:$0xf]
    %v130 = vld [vmem:[#allocation5 + $0xfc] sm:$0xf]
    %v131 = vld [vmem:[#allocation5 + $0x100] sm:$0xf]
    %v132 = vld [vmem:[#allocation5 + $0x104] sm:$0xf]
    %v133 = vld [vmem:[#allocation5 + $0x108] sm:$0xf]
    %v134 = vld [vmem:[#allocation5 + $0x10c] sm:$0xf]
    %v135 = vld [vmem:[#allocation5 + $0x110] sm:$0xf]
    %v136 = vld [vmem:[#allocation5 + $0x114] sm:$0xf]
    %v137 = vld [vmem:[#allocation5 + $0x118] sm:$0xf]
    %v138 = vld [vmem:[#allocation5 + $0x11c] sm:$0xf]
    %v139 = vld [vmem:[#allocation5 + $0x120] sm:$0xf]
    %v140 = vld [vmem:[#allocation5 + $0x124] sm:$0xf]
    %v141 = vld [vmem:[#allocation5 + $0x128] sm:$0xf]
    %v142 = vld [vmem:[#allocation5 + $0x12c] sm:$0xf]
    %v143 = vld [vmem:[#allocation5 + $0x130] sm:$0xf]
    %v144 = vld [vmem:[#allocation5 + $0x134] sm:$0xf]
    %v145 = vld [vmem:[#allocation5 + $0x138] sm:$0xf]
    %v146 = vld [vmem:[#allocation5 + $0x13c] sm:$0xf]
    %v147 = vld [vmem:[#allocation5 + $0x140] sm:$0xf]
    %v148 = vld [vmem:[#allocation5 + $0x144] sm:$0xf]
    %v149 = vld [vmem:[#allocation5 + $0x148] sm:$0xf]
    %v150 = vld [vmem:[#allocation5 + $0x14c] sm:$0xf]
    %v151 = vld [vmem:[#allocation5 + $0x150] sm:$0xf]
    %v152 = vld [vmem:[#allocation5 + $0x154] sm:$0xf]
    %v153 = vld [vmem:[#allocation5 + $0x158] sm:$0xf]
    %v154 = vld [vmem:[#allocation5 + $0x15c] sm:$0xf]
    %v155 = vld [vmem:[#allocation5 + $0x160] sm:$0xf]
    %v156 = vld [vmem:[#allocation5 + $0x164] sm:$0xf]
    %v157 = vld [vmem:[#allocation5 + $0x168] sm:$0xf]
    %v158 = vld [vmem:[#allocation5 + $0x16c] sm:$0xf]
    %v159 = vld [vmem:[#allocation5 + $0x170] sm:$0xf]
    %v160 = vld [vmem:[#allocation5 + $0x174] sm:$0xf]
    %v161 = vld [vmem:[#allocation5 + $0x178] sm:$0xf]
    %v162 = vld [vmem:[#allocation5 + $0x17c] sm:$0xf]
    %v163 = vld [vmem:[#allocation5 + $0x180] sm:$0xf]
    %v164 = vld [vmem:[#allocation5 + $0x184] sm:$0xf]
    %v165 = vld [vmem:[#allocation5 + $0x188] sm:$0xf]
    %v166 = vld [vmem:[#allocation5 + $0x18c] sm:$0xf]
    %v167 = vld [vmem:[#allocation5 + $0x190] sm:$0xf]
    %v168 = vld [vmem:[#allocation5 + $0x194] sm:$0xf]
    %v169 = vld [vmem:[#allocation5 + $0x198] sm:$0xf]
    %v170 = vld [vmem:[#allocation5 + $0x19c] sm:$0xf]
    %v171 = vld [vmem:[#allocation5 + $0x1a0] sm:$0xf]
    %v172 = vld [vmem:[#allocation5 + $0x1a4] sm:$0xf]
    %v173 = vld [vmem:[#allocation5 + $0x1a8] sm:$0xf]
    %v174 = vld [vmem:[#allocation5 + $0x1ac] sm:$0xf]
    %v175 = vld [vmem:[#allocation5 + $0x1b0] sm:$0xf]
    %v176 = vld [vmem:[#allocation5 + $0x1b4] sm:$0xf]
    %v177 = vld [vmem:[#allocation5 + $0x1b8] sm:$0xf]
    %v178 = vld [vmem:[#allocation5 + $0x1bc] sm:$0xf]
    %v179 = vld [vmem:[#allocation5 + $0x1c0] sm:$0xf]
    %v180 = vld [vmem:[#allocation5 + $0x1c4] sm:$0xf]
    %v181 = vld [vmem:[#allocation5 + $0x1c8] sm:$0xf]
    %v182 = vld [vmem:[#allocation5 + $0x1cc] sm:$0xf]
    %v183 = vld [vmem:[#allocation5 + $0x1d0] sm:$0xf]
    %v184 = vld [vmem:[#allocation5 + $0x1d4] sm:$0xf]
    %v185 = vld [vmem:[#allocation5 + $0x1d8] sm:$0xf]
    %v186 = vld [vmem:[#allocation5 + $0x1dc] sm:$0xf]
    %v187 = vld [vmem:[#allocation5 + $0x1e0] sm:$0xf]
    %v188 = vld [vmem:[#allocation5 + $0x1e4] sm:$0xf]
    %v189 = vld [vmem:[#allocation5 + $0x1e8] sm:$0xf]
    %v190 = vld [vmem:[#allocation5 + $0x1ec] sm:$0xf]
    %v191 = vld [vmem:[#allocation5 + $0x1f0] sm:$0xf]
    %v192 = vld [vmem:[#allocation5 + $0x1f4] sm:$0xf]
    %v193 = vld [vmem:[#allocation5 + $0x1f8] sm:$0xf]
    %v194 = vld [vmem:[#allocation5 + $0x1fc] sm:$0xf]
    %v203 = vunpack.c.l.b16 %v59
    %v204 = vunpack.c.h.b16 %v59
    %v205 = vunpack.c.l.b16 %v60
    %v206 = vunpack.c.h.b16 %v60
    %v207 = vunpack.c.l.b16 %v61
    %v208 = vunpack.c.h.b16 %v61
    %v209 = vunpack.c.l.b16 %v62
    %v210 = vunpack.c.h.b16 %v62
    %v211 = vunpack.c.l.b16 %v63
    %v212 = vunpack.c.h.b16 %v63
    %v213 = vunpack.c.l.b16 %v64
    %v214 = vunpack.c.h.b16 %v64
    %v215 = vunpack.c.l.b16 %v65
    %v216 = vunpack.c.h.b16 %v65
    %v217 = vunpack.c.l.b16 %v66
    %v218 = vunpack.c.h.b16 %v66
    %v219 = vpack.c.b16 %v211, %v203
    %v220 = vpack.c.b16 %v212, %v204
    %v221 = vpack.c.b16 %v213, %v205
    %v222 = vpack.c.b16 %v214, %v206
    %v223 = vpack.c.b16 %v215, %v207
    %v224 = vpack.c.b16 %v216, %v208
    %v225 = vpack.c.b16 %v217, %v209
    %v226 = vpack.c.b16 %v218, %v210
    %v363 = vunpack.c.l.b16 %v67
    %v364 = vunpack.c.l.b16 %v68
    %v365 = vunpack.c.l.b16 %v69
    %v366 = vunpack.c.l.b16 %v70
    %v367 = vunpack.c.l.b16 %v71
    %v368 = vunpack.c.l.b16 %v72
    %v369 = vunpack.c.l.b16 %v73
    %v370 = vunpack.c.l.b16 %v74
    %v371 = vunpack.c.l.b16 %v75
    %v372 = vunpack.c.l.b16 %v76
    %v373 = vunpack.c.l.b16 %v77
    %v374 = vunpack.c.l.b16 %v78
    %v375 = vunpack.c.l.b16 %v79
    %v376 = vunpack.c.l.b16 %v80
    %v377 = vunpack.c.l.b16 %v81
    %v378 = vunpack.c.l.b16 %v82
    %v379 = vunpack.c.l.b16 %v83
    %v380 = vunpack.c.l.b16 %v84
    %v381 = vunpack.c.l.b16 %v85
    %v382 = vunpack.c.l.b16 %v86
    %v383 = vunpack.c.l.b16 %v87
    %v384 = vunpack.c.l.b16 %v88
    %v385 = vunpack.c.l.b16 %v89
    %v386 = vunpack.c.l.b16 %v90
    %v387 = vunpack.c.l.b16 %v91
    %v388 = vunpack.c.l.b16 %v92
    %v389 = vunpack.c.l.b16 %v93
    %v390 = vunpack.c.l.b16 %v94
    %v391 = vunpack.c.l.b16 %v95
    %v392 = vunpack.c.l.b16 %v96
    %v393 = vunpack.c.l.b16 %v97
    %v394 = vunpack.c.l.b16 %v98
    %v395 = vunpack.c.l.b16 %v99
    %v396 = vunpack.c.l.b16 %v100
    %v397 = vunpack.c.l.b16 %v101
    %v398 = vunpack.c.l.b16 %v102
    %v399 = vunpack.c.l.b16 %v103
    %v400 = vunpack.c.l.b16 %v104
    %v401 = vunpack.c.l.b16 %v105
    %v402 = vunpack.c.l.b16 %v106
    %v403 = vunpack.c.l.b16 %v107
    %v404 = vunpack.c.l.b16 %v108
    %v405 = vunpack.c.l.b16 %v109
    %v406 = vunpack.c.l.b16 %v110
    %v407 = vunpack.c.l.b16 %v111
    %v408 = vunpack.c.l.b16 %v112
    %v409 = vunpack.c.l.b16 %v113
    %v410 = vunpack.c.l.b16 %v114
    %v411 = vunpack.c.l.b16 %v115
    %v412 = vunpack.c.l.b16 %v116
    %v413 = vunpack.c.l.b16 %v117
    %v414 = vunpack.c.l.b16 %v118
    %v415 = vunpack.c.l.b16 %v119
    %v416 = vunpack.c.l.b16 %v120
    %v417 = vunpack.c.l.b16 %v121
    %v418 = vunpack.c.l.b16 %v122
    %v419 = vunpack.c.l.b16 %v123
    %v420 = vunpack.c.l.b16 %v124
    %v421 = vunpack.c.l.b16 %v125
    %v422 = vunpack.c.l.b16 %v126
    %v423 = vunpack.c.l.b16 %v127
    %v424 = vunpack.c.l.b16 %v128
    %v425 = vunpack.c.l.b16 %v129
    %v426 = vunpack.c.l.b16 %v130
    %v427 = vunpack.c.l.b16 %v131
    %v428 = vunpack.c.l.b16 %v132
    %v429 = vunpack.c.l.b16 %v133
    %v430 = vunpack.c.l.b16 %v134
    %v431 = vunpack.c.l.b16 %v135
    %v432 = vunpack.c.l.b16 %v136
    %v433 = vunpack.c.l.b16 %v137
    %v434 = vunpack.c.l.b16 %v138
    %v435 = vunpack.c.l.b16 %v139
    %v436 = vunpack.c.l.b16 %v140
    %v437 = vunpack.c.l.b16 %v141
    %v438 = vunpack.c.l.b16 %v142
    %v439 = vunpack.c.l.b16 %v143
    %v440 = vunpack.c.l.b16 %v144
    %v441 = vunpack.c.l.b16 %v145
    %v442 = vunpack.c.l.b16 %v146
    %v443 = vunpack.c.l.b16 %v147
    %v444 = vunpack.c.l.b16 %v148
    %v445 = vunpack.c.l.b16 %v149
    %v446 = vunpack.c.l.b16 %v150
    %v447 = vunpack.c.l.b16 %v151
    %v448 = vunpack.c.l.b16 %v152
    %v449 = vunpack.c.l.b16 %v153
    %v450 = vunpack.c.l.b16 %v154
    %v451 = vunpack.c.l.b16 %v155
    %v452 = vunpack.c.l.b16 %v156
    %v453 = vunpack.c.l.b16 %v157
    %v454 = vunpack.c.l.b16 %v158
    %v455 = vunpack.c.l.b16 %v159
    %v456 = vunpack.c.l.b16 %v160
    %v457 = vunpack.c.l.b16 %v161
    %v458 = vunpack.c.l.b16 %v162
    %v459 = vunpack.c.l.b16 %v163
    %v460 = vunpack.c.l.b16 %v164
    %v461 = vunpack.c.l.b16 %v165
    %v462 = vunpack.c.l.b16 %v166
    %v463 = vunpack.c.l.b16 %v167
    %v464 = vunpack.c.l.b16 %v168
    %v465 = vunpack.c.l.b16 %v169
    %v466 = vunpack.c.l.b16 %v170
    %v467 = vunpack.c.l.b16 %v171
    %v468 = vunpack.c.l.b16 %v172
    %v469 = vunpack.c.l.b16 %v173
    %v470 = vunpack.c.l.b16 %v174
    %v471 = vunpack.c.l.b16 %v175
    %v472 = vunpack.c.l.b16 %v176
    %v473 = vunpack.c.l.b16 %v177
    %v474 = vunpack.c.l.b16 %v178
    %v475 = vunpack.c.l.b16 %v179
    %v476 = vunpack.c.l.b16 %v180
    %v477 = vunpack.c.l.b16 %v181
    %v478 = vunpack.c.l.b16 %v182
    %v479 = vunpack.c.l.b16 %v183
    %v480 = vunpack.c.l.b16 %v184
    %v481 = vunpack.c.l.b16 %v185
    %v482 = vunpack.c.l.b16 %v186
    %v483 = vunpack.c.l.b16 %v187
    %v484 = vunpack.c.l.b16 %v188
    %v485 = vunpack.c.l.b16 %v189
    %v486 = vunpack.c.l.b16 %v190
    %v487 = vunpack.c.l.b16 %v191
    %v488 = vunpack.c.l.b16 %v192
    %v489 = vunpack.c.l.b16 %v193
    %v490 = vunpack.c.l.b16 %v194
    %v491 = vpack.c.b16 %v364, %v363
    %v492 = vpack.c.b16 %v366, %v365
    %v493 = vpack.c.b16 %v368, %v367
    %v494 = vpack.c.b16 %v370, %v369
    %v495 = vpack.c.b16 %v372, %v371
    %v496 = vpack.c.b16 %v374, %v373
    %v497 = vpack.c.b16 %v376, %v375
    %v498 = vpack.c.b16 %v378, %v377
    %v499 = vpack.c.b16 %v380, %v379
    %v500 = vpack.c.b16 %v382, %v381
    %v501 = vpack.c.b16 %v384, %v383
    %v502 = vpack.c.b16 %v386, %v385
    %v503 = vpack.c.b16 %v388, %v387
    %v504 = vpack.c.b16 %v390, %v389
    %v505 = vpack.c.b16 %v392, %v391
    %v506 = vpack.c.b16 %v394, %v393
    %v507 = vpack.c.b16 %v396, %v395
    %v508 = vpack.c.b16 %v398, %v397
    %v509 = vpack.c.b16 %v400, %v399
    %v510 = vpack.c.b16 %v402, %v401
    %v511 = vpack.c.b16 %v404, %v403
    %v512 = vpack.c.b16 %v406, %v405
    %v513 = vpack.c.b16 %v408, %v407
    %v514 = vpack.c.b16 %v410, %v409
    %v515 = vpack.c.b16 %v412, %v411
    %v516 = vpack.c.b16 %v414, %v413
    %v517 = vpack.c.b16 %v416, %v415
    %v518 = vpack.c.b16 %v418, %v417
    %v519 = vpack.c.b16 %v420, %v419
    %v520 = vpack.c.b16 %v422, %v421
    %v521 = vpack.c.b16 %v424, %v423
    %v522 = vpack.c.b16 %v426, %v425
    %v523 = vpack.c.b16 %v428, %v427
    %v524 = vpack.c.b16 %v430, %v429
    %v525 = vpack.c.b16 %v432, %v431
    %v526 = vpack.c.b16 %v434, %v433
    %v527 = vpack.c.b16 %v436, %v435
    %v528 = vpack.c.b16 %v438, %v437
    %v529 = vpack.c.b16 %v440, %v439
    %v530 = vpack.c.b16 %v442, %v441
    %v531 = vpack.c.b16 %v444, %v443
    %v532 = vpack.c.b16 %v446, %v445
    %v533 = vpack.c.b16 %v448, %v447
    %v534 = vpack.c.b16 %v450, %v449
    %v535 = vpack.c.b16 %v452, %v451
    %v536 = vpack.c.b16 %v454, %v453
    %v537 = vpack.c.b16 %v456, %v455
    %v538 = vpack.c.b16 %v458, %v457
    %v539 = vpack.c.b16 %v460, %v459
    %v540 = vpack.c.b16 %v462, %v461
    %v541 = vpack.c.b16 %v464, %v463
    %v542 = vpack.c.b16 %v466, %v465
    %v543 = vpack.c.b16 %v468, %v467
    %v544 = vpack.c.b16 %v470, %v469
    %v545 = vpack.c.b16 %v472, %v471
    %v546 = vpack.c.b16 %v474, %v473
    %v547 = vpack.c.b16 %v476, %v475
    %v548 = vpack.c.b16 %v478, %v477
    %v549 = vpack.c.b16 %v480, %v479
    %v550 = vpack.c.b16 %v482, %v481
    %v551 = vpack.c.b16 %v484, %v483
    %v552 = vpack.c.b16 %v486, %v485
    %v553 = vpack.c.b16 %v488, %v487
    %v554 = vpack.c.b16 %v490, %v489
    %619 = vmatprep.subr.bf16.mxu0 0
    %620 = vmatpush1.bf16.msra.mxu0 %v498
    %621 = vmatprep.subr.bf16.mxu0 0
    %622 = vmatpush1.bf16.msra.mxu0 %v497
    %623 = vmatprep.subr.bf16.mxu0 0
    %624 = vmatpush1.bf16.msra.mxu0 %v496
    %625 = vmatprep.subr.bf16.mxu0 0
    %626 = vmatpush1.bf16.msra.mxu0 %v495
    %627 = vmatprep.subr.bf16.mxu0 0
    %628 = vmatpush1.bf16.msra.mxu0 %v494
    %629 = vmatprep.subr.bf16.mxu0 0
    %630 = vmatpush1.bf16.msra.mxu0 %v493
    %631 = vmatprep.subr.bf16.mxu0 0
    %632 = vmatpush1.bf16.msra.mxu0 %v492
    %633 = vmatprep.subr.bf16.mxu0 0
    %634 = vmatpush1.bf16.msra.mxu0 %v491
    %635 = vmatprep.subr.bf16.mxu0 0
    %636 = vmatpush2.bf16.msra.mxu0 %v506
    %637 = vmatprep.subr.bf16.mxu0 0
    %638 = vmatpush2.bf16.msra.mxu0 %v505
    %639 = vmatprep.subr.bf16.mxu0 0
    %640 = vmatpush2.bf16.msra.mxu0 %v504
    %641 = vmatprep.subr.bf16.mxu0 0
    %642 = vmatpush2.bf16.msra.mxu0 %v503
    %643 = vmatprep.subr.bf16.mxu0 0
    %644 = vmatpush2.bf16.msra.mxu0 %v502
    %645 = vmatprep.subr.bf16.mxu0 0
    %646 = vmatpush2.bf16.msra.mxu0 %v501
    %647 = vmatprep.subr.bf16.mxu0 0
    %648 = vmatpush2.bf16.msra.mxu0 %v500
    %649 = vmatprep.subr.bf16.mxu0 0
    %650 = vmatpush2.bf16.msra.mxu0 %v499
    %651 = vmatprep.mubr.bf16.mxu0 %v220
    %652 = vmatmul.mubr.bf16.gmra.mxu0 %v219
    %v653 = vpop.f32.mrf.mxu0
    %v654 = vadd.f32 0.0, %v653
    %v655 = vpop.f32.mrf.mxu0
    %v656 = vpop.f32.mrf.mxu0
    %v657 = vadd.f32 0.0, %v656
    %v658 = vpop.f32.mrf.mxu0
    %659 = vdwg.mxu0
    %660 = vmatprep.subr.bf16.mxu0 0
    %661 = vmatpush1.bf16.msra.mxu0 %v514
    %662 = vmatprep.subr.bf16.mxu0 0
    %663 = vmatpush1.bf16.msra.mxu0 %v513
    %664 = vmatprep.subr.bf16.mxu0 0
    %665 = vmatpush1.bf16.msra.mxu0 %v512
    %666 = vmatprep.subr.bf16.mxu0 0
    %667 = vmatpush1.bf16.msra.mxu0 %v511
    %668 = vmatprep.subr.bf16.mxu0 0
    %669 = vmatpush1.bf16.msra.mxu0 %v510
    %670 = vmatprep.subr.bf16.mxu0 0
    %671 = vmatpush1.bf16.msra.mxu0 %v509
    %672 = vmatprep.subr.bf16.mxu0 0
    %673 = vmatpush1.bf16.msra.mxu0 %v508
    %674 = vmatprep.subr.bf16.mxu0 0
    %675 = vmatpush1.bf16.msra.mxu0 %v507
    %676 = vmatprep.subr.bf16.mxu0 0
    %677 = vmatpush2.bf16.msra.mxu0 %v522
    %678 = vmatprep.subr.bf16.mxu0 0
    %679 = vmatpush2.bf16.msra.mxu0 %v521
    %680 = vmatprep.subr.bf16.mxu0 0
    %681 = vmatpush2.bf16.msra.mxu0 %v520
    %682 = vmatprep.subr.bf16.mxu0 0
    %683 = vmatpush2.bf16.msra.mxu0 %v519
    %684 = vmatprep.subr.bf16.mxu0 0
    %685 = vmatpush2.bf16.msra.mxu0 %v518
    %686 = vmatprep.subr.bf16.mxu0 0
    %687 = vmatpush2.bf16.msra.mxu0 %v517
    %688 = vmatprep.subr.bf16.mxu0 0
    %689 = vmatpush2.bf16.msra.mxu0 %v516
    %690 = vmatprep.subr.bf16.mxu0 0
    %691 = vmatpush2.bf16.msra.mxu0 %v515
    %692 = vmatprep.mubr.bf16.mxu0 %v222
    %693 = vmatmul.mubr.bf16.gmra.mxu0 %v221
    %v694 = vpop.f32.mrf.mxu0
    %v695 = vadd.f32 %v654, %v694
    %v696 = vpop.f32.mrf.mxu0
    %v697 = vpop.f32.mrf.mxu0
    %v698 = vadd.f32 %v657, %v697
    %v699 = vpop.f32.mrf.mxu0
    %700 = vdwg.mxu0
    %701 = vmatprep.subr.bf16.mxu0 0
    %702 = vmatpush1.bf16.msra.mxu0 %v530
    %703 = vmatprep.subr.bf16.mxu0 0
    %704 = vmatpush1.bf16.msra.mxu0 %v529
    %705 = vmatprep.subr.bf16.mxu0 0
    %706 = vmatpush1.bf16.msra.mxu0 %v528
    %707 = vmatprep.subr.bf16.mxu0 0
    %708 = vmatpush1.bf16.msra.mxu0 %v527
    %709 = vmatprep.subr.bf16.mxu0 0
    %710 = vmatpush1.bf16.msra.mxu0 %v526
    %711 = vmatprep.subr.bf16.mxu0 0
    %712 = vmatpush1.bf16.msra.mxu0 %v525
    %713 = vmatprep.subr.bf16.mxu0 0
    %714 = vmatpush1.bf16.msra.mxu0 %v524
    %715 = vmatprep.subr.bf16.mxu0 0
    %716 = vmatpush1.bf16.msra.mxu0 %v523
    %717 = vmatprep.subr.bf16.mxu0 0
    %718 = vmatpush2.bf16.msra.mxu0 %v538
    %719 = vmatprep.subr.bf16.mxu0 0
    %720 = vmatpush2.bf16.msra.mxu0 %v537
    %721 = vmatprep.subr.bf16.mxu0 0
    %722 = vmatpush2.bf16.msra.mxu0 %v536
    %723 = vmatprep.subr.bf16.mxu0 0
    %724 = vmatpush2.bf16.msra.mxu0 %v535
    %725 = vmatprep.subr.bf16.mxu0 0
    %726 = vmatpush2.bf16.msra.mxu0 %v534
    %727 = vmatprep.subr.bf16.mxu0 0
    %728 = vmatpush2.bf16.msra.mxu0 %v533
    %729 = vmatprep.subr.bf16.mxu0 0
    %730 = vmatpush2.bf16.msra.mxu0 %v532
    %731 = vmatprep.subr.bf16.mxu0 0
    %732 = vmatpush2.bf16.msra.mxu0 %v531
    %733 = vmatprep.mubr.bf16.mxu0 %v224
    %734 = vmatmul.mubr.bf16.gmra.mxu0 %v223
    %v735 = vpop.f32.mrf.mxu0
    %v736 = vadd.f32 %v695, %v735
    %v737 = vpop.f32.mrf.mxu0
    %v738 = vpop.f32.mrf.mxu0
    %v739 = vadd.f32 %v698, %v738
    %v740 = vpop.f32.mrf.mxu0
    %741 = vdwg.mxu0
    %742 = vmatprep.subr.bf16.mxu0 0
    %743 = vmatpush1.bf16.msra.mxu0 %v546
    %744 = vmatprep.subr.bf16.mxu0 0
    %745 = vmatpush1.bf16.msra.mxu0 %v545
    %746 = vmatprep.subr.bf16.mxu0 0
    %747 = vmatpush1.bf16.msra.mxu0 %v544
    %748 = vmatprep.subr.bf16.mxu0 0
    %749 = vmatpush1.bf16.msra.mxu0 %v543
    %750 = vmatprep.subr.bf16.mxu0 0
    %751 = vmatpush1.bf16.msra.mxu0 %v542
    %752 = vmatprep.subr.bf16.mxu0 0
    %753 = vmatpush1.bf16.msra.mxu0 %v541
    %754 = vmatprep.subr.bf16.mxu0 0
    %755 = vmatpush1.bf16.msra.mxu0 %v540
    %756 = vmatprep.subr.bf16.mxu0 0
    %757 = vmatpush1.bf16.msra.mxu0 %v539
    %758 = vmatprep.subr.bf16.mxu0 0
    %759 = vmatpush2.bf16.msra.mxu0 %v554
    %760 = vmatprep.subr.bf16.mxu0 0
    %761 = vmatpush2.bf16.msra.mxu0 %v553
    %762 = vmatprep.subr.bf16.mxu0 0
    %763 = vmatpush2.bf16.msra.mxu0 %v552
    %764 = vmatprep.subr.bf16.mxu0 0
    %765 = vmatpush2.bf16.msra.mxu0 %v551
    %766 = vmatprep.subr.bf16.mxu0 0
    %767 = vmatpush2.bf16.msra.mxu0 %v550
    %768 = vmatprep.subr.bf16.mxu0 0
    %769 = vmatpush2.bf16.msra.mxu0 %v549
    %770 = vmatprep.subr.bf16.mxu0 0
    %771 = vmatpush2.bf16.msra.mxu0 %v548
    %772 = vmatprep.subr.bf16.mxu0 0
    %773 = vmatpush2.bf16.msra.mxu0 %v547
    %774 = vmatprep.mubr.bf16.mxu0 %v226
    %775 = vmatmul.mubr.bf16.gmra.mxu0 %v225
    %v776 = vpop.f32.mrf.mxu0
    %v777 = vadd.f32 %v736, %v776
    %v778 = vpop.f32.mrf.mxu0
    %v779 = vpop.f32.mrf.mxu0
    %v780 = vadd.f32 %v739, %v779
    %v781 = vpop.f32.mrf.mxu0
    %782 = vdwg.mxu0
    %v783 = vadd.f32 %v57, %v777
    %v784 = vadd.f32 %v58, %v780
    %785 = vst [vmem:[#allocation7] sm:$0xff] %v783
    %786 = vst [vmem:[#allocation7 + $0x8] sm:$0xff] %v784
    // Predicated region
    $region26: #{tpu_custom_call.1} parent=1 // pred_check
      _
    $region27: #{tpu_custom_call.1} parent=1 // pred_check_branch
      %788 = sbr.rel (0) target = $region29
    $region28: #{tpu_custom_call.1} parent=1 // pred_region
      %s790 = ssub.s32 256, 256
      %791 = vsyncadd [#allocation4], %s790
      %s792 = sshll.u32 [#allocation7], 4
      %s793 = int_to_ptr.vmem [resolvable:$true] %s792
      %798 = dma.vmem_to_hbm [thread:$0]  %s793, 256, %s3, [#allocation4], 128, 128, 8
    $region29: #{tpu_custom_call.1} parent=1 // pred_fallthru
      _
    // Predicated region
    $region30: #{tpu_custom_call.1} parent=1 // pred_check
      _
    $region31: #{tpu_custom_call.1} parent=1 // pred_check_branch
      %800 = sbr.rel (0) target = $region33
    $region32: #{tpu_custom_call.1} parent=1 // pred_region
      %801 = dma.done [#allocation4], 256
    $region33: #{tpu_custom_call.1} parent=1 // pred_fallthru
      _
    %802 = vsyncpa [#allocation3], 1
    %803 = vsyncpa [#allocation6], 1
    %804 = vsyncpa [#allocation4], 1

</llo_original>
